<compile_context>
chip_gen: v7x
topology: tpu7x:2x2x1
jax: 0.10.0
libtpu: 0.0.40
codegen_flags: <defaults>
</compile_context>

<pallas_src>
import functools

import jax
import jax.numpy as jnp
from jax.experimental import pallas as pl
from jax.experimental.pallas import tpu as pltpu

R1_GAMMA = 10.0


def _r1_ssq_kernel(g_ref, part_ref, acc_ref, *, scale):
    """Streams one (B, TF) tile per step; emits one scaled partial per shard."""
    k = pl.program_id(1)

    @pl.when(k == 0)
    def _init():
        acc_ref[...] = jnp.zeros_like(acc_ref)

    # Cast in-kernel (input stays in its native dtype in HBM); elementwise
    # FMA only -> hides entirely under the streaming DMA.
    g = g_ref[...].astype(jnp.float32)
    acc_ref[...] += g * g

    @pl.when(k == pl.num_programs(1) - 1)
    def _finalize():
        # Single cross-lane reduce per shard, outside the streaming loop.
        part_ref[0, 0] = scale * jnp.sum(acc_ref[...])


def r1_penalty_from_grad(grad_x, r1_gamma=R1_GAMMA):
    """0.5 * gamma * mean_b ||grad_x[b]||_2^2 via a tiled Pallas reduction."""
    B = grad_x.shape[0]
    g2d = grad_x.reshape(B, -1)          # native dtype; no wrapper-side f32 copy
    F = g2d.shape[1]
    dsize = g2d.dtype.itemsize

    # Feature tile sized for ~2 MiB per pipeline buffer: big enough to sit near
    # the HBM roofline, small enough (2 input buffers + f32 accumulator) to fit
    # every generation's default scoped-VMEM budget (incl. v7x's 64 MiB VMEM).
    target_buf_bytes = 2 * 1024 * 1024
    tf = max(128, (target_buf_bytes // max(1, B * dsize)) // 128 * 128)
    f_ceil = pl.cdiv(F, 128) * 128
    tf = min(tf, f_ceil)

    num_tiles = pl.cdiv(F, tf)
    nshards = 2 if num_tiles >= 2 else 1          # megacore split (v7x)
    k_per = pl.cdiv(num_tiles, nshards)
    f_pad = nshards * k_per * tf
    if f_pad != F:
        # Zero padding does not change the sum of squares.
        g2d = jnp.pad(g2d, ((0, 0), (0, f_pad - F)))

    scale = 0.5 * float(r1_gamma) / float(B)

    # 2 double-buffered input tiles + f32 accumulator + headroom.
    vmem_bytes = 2 * B * tf * dsize + B * tf * 4 + (1 << 20)
    vmem_bytes = max(int(vmem_bytes), 16 * 1024 * 1024)

    partials = pl.pallas_call(
        functools.partial(_r1_ssq_kernel, scale=scale),
        out_shape=jax.ShapeDtypeStruct((nshards, 1), jnp.float32),
        grid_spec=pltpu.PrefetchScalarGridSpec(
            num_scalar_prefetch=0,
            grid=(nshards, k_per),
            in_specs=[pl.BlockSpec((B, tf), lambda s, k: (0, s * k_per + k))],
            out_specs=pl.BlockSpec(
                (1, 1), lambda s, k: (s, 0),
                memory_space=pltpu.MemorySpace.SMEM),
            scratch_shapes=[pltpu.VMEM((B, tf), jnp.float32)],
        ),
        compiler_params=pltpu.CompilerParams(
            dimension_semantics=("parallel", "arbitrary"),
            vmem_limit_bytes=vmem_bytes,
        ),
        cost_estimate=pl.CostEstimate(
            flops=2 * B * f_pad,
            transcendentals=0,
            bytes_accessed=B * f_pad * dsize + nshards * 4,
        ),
    )(g2d)

    # Tiny epilogue: sum the per-shard partials (already scaled by 0.5*gamma/B).
    return jnp.sum(partials)


def r1_regularization(disc_fn, x, r1_gamma=R1_GAMMA):
    """Full module semantics: x_pred = disc_fn(x); grad of x_pred.sum() wrt x."""
    # TODO(synk): torch.autograd.grad has no Pallas equivalent; done with jax.grad here.
    grad_x = jax.grad(lambda xx: disc_fn(xx).sum())(x)
    return r1_penalty_from_grad(grad_x, r1_gamma)


if __name__ == "__main__":
    key = jax.random.PRNGKey(0)
    B, C, H, W = 2, 4, 16, 16
    kx, kw = jax.random.split(key)

    # input x (NCHW, like the PyTorch module)
    x = jax.random.normal(kx, (B, C, H, W), dtype=jnp.float32)

    # deterministic synthetic "discriminator" parameters (stand-in for the
    # network that produced x_pred in the PyTorch code)
    w = 0.1 * jax.random.normal(kw, (C, H, W), dtype=jnp.float32)

    def disc(xx):
        # tiny nonlinear per-sample scalar score so grad_x is nontrivial
        return jnp.tanh(xx * w[None]).sum(axis=(1, 2, 3))

    r1_loss = r1_regularization(disc, x)
    r1_loss = jax.block_until_ready(r1_loss)

    # pure-JAX reference of the penalty reduction
    grad_x_ref = jax.grad(lambda xx: disc(xx).sum())(x)
    ref = 0.5 * R1_GAMMA * jnp.mean(
        jnp.sum(grad_x_ref.reshape(B, -1) ** 2, axis=1)
    )
    assert jnp.allclose(r1_loss, ref, rtol=1e-5, atol=1e-6), (r1_loss, ref)

    print("KERNEL_OK")
</pallas_src>

<mosaic_0001>
module attributes {stable_mosaic.version = 11 : i64} {
  func.func @_r1_ssq_kernel(%arg0: i32, %arg1: i32, %arg2: memref<2x1024xf32, #tpu.memory_space<vmem>>, %arg3: memref<1x1xf32, #tpu.memory_space<smem>>, %arg4: memref<2x1024xf32, #tpu.memory_space<vmem>>) attributes {dimension_semantics = [#tpu.dimension_semantics<parallel>, #tpu.dimension_semantics<arbitrary>], iteration_bounds = array<i64: 1, 1>, scalar_prefetch = 0 : i64, scratch_operands = 1 : i64, tpu.core_type = #tpu.core_type<tc>, window_params = [{transform_indices = @transform_0, window_bounds = array<i64: 2, 1024>}, {transform_indices = @transform_1, window_bounds = array<i64: 1, 1>}]} {
    %c0_i32 = arith.constant 0 : i32
    %0 = arith.cmpi eq, %arg1, %c0_i32 : i32
    %1 = arith.extui %0 : i1 to i32
    %c0_i32_0 = arith.constant 0 : i32
    %2 = arith.cmpi ne, %1, %c0_i32_0 : i32
    scf.if %2 {
      %cst = arith.constant 0.000000e+00 : f32
      %11 = vector.broadcast %cst : f32 to vector<2x1024xf32>
      %c0_8 = arith.constant 0 : index
      %c0_9 = arith.constant 0 : index
      %12 = vector.load %arg4[%c0_8, %c0_9] : memref<2x1024xf32, #tpu.memory_space<vmem>>, vector<2x1024xf32>
      tpu.vector_store %arg4[%c0_8, %c0_9], %11 {strides = array<i32>} : memref<2x1024xf32, #tpu.memory_space<vmem>>, vector<2x1024xf32>,
    } else {
    }
    %c0 = arith.constant 0 : index
    %c0_1 = arith.constant 0 : index
    %3 = vector.load %arg2[%c0, %c0_1] : memref<2x1024xf32, #tpu.memory_space<vmem>>, vector<2x1024xf32>
    %c0_2 = arith.constant 0 : index
    %c0_3 = arith.constant 0 : index
    %4 = vector.load %arg4[%c0_2, %c0_3] : memref<2x1024xf32, #tpu.memory_space<vmem>>, vector<2x1024xf32>
    %5 = arith.mulf %3, %3 : vector<2x1024xf32>
    %6 = arith.addf %4, %5 : vector<2x1024xf32>
    %c0_4 = arith.constant 0 : index
    %c0_5 = arith.constant 0 : index
    %7 = vector.load %arg4[%c0_4, %c0_5] : memref<2x1024xf32, #tpu.memory_space<vmem>>, vector<2x1024xf32>
    tpu.vector_store %arg4[%c0_4, %c0_5], %6 {strides = array<i32>} : memref<2x1024xf32, #tpu.memory_space<vmem>>, vector<2x1024xf32>,
    %c0_i32_6 = arith.constant 0 : i32
    %8 = arith.cmpi eq, %arg1, %c0_i32_6 : i32
    %9 = arith.extui %8 : i1 to i32
    %c0_i32_7 = arith.constant 0 : i32
    %10 = arith.cmpi ne, %9, %c0_i32_7 : i32
    scf.if %10 {
      %c0_8 = arith.constant 0 : index
      %c0_9 = arith.constant 0 : index
      %11 = vector.load %arg4[%c0_8, %c0_9] : memref<2x1024xf32, #tpu.memory_space<vmem>>, vector<2x1024xf32>
      %12 = vector.shape_cast %11 : vector<2x1024xf32> to vector<1x2x1024xf32>
      %cst = arith.constant dense<0.000000e+00> : vector<1xf32>
      %13 = vector.multi_reduction <add>, %12, %cst [1, 2] : vector<1x2x1024xf32> to vector<1xf32>
      %14 = vector.shape_cast %13 : vector<1xf32> to vector<1x1x1xf32>
      %15 = vector.extract %14[0, 0, 0] : f32 from vector<1x1x1xf32>
      %cst_10 = arith.constant 2.500000e+00 : f32
      %16 = arith.mulf %cst_10, %15 : f32
      %c0_11 = arith.constant 0 : index
      %c0_12 = arith.constant 0 : index
      %17 = memref.load %arg3[%c0_11, %c0_12] : memref<1x1xf32, #tpu.memory_space<smem>>
      memref.store %16, %arg3[%c0_11, %c0_12] : memref<1x1xf32, #tpu.memory_space<smem>>
    } else {
    }
    return
  }
  func.func @transform_0(%arg0: i32, %arg1: i32) -> (i32, i32) {
    %c1_i32 = arith.constant 1 : i32
    %0 = arith.muli %arg0, %c1_i32 : i32
    %1 = arith.addi %0, %arg1 : i32
    %c0_i32 = arith.constant 0 : i32
    %c0_i32_0 = arith.constant 0 : i32
    return %c0_i32, %1 : i32, i32
  }
  func.func @transform_1(%arg0: i32, %arg1: i32) -> (i32, i32) {
    %c0_i32 = arith.constant 0 : i32
    %c0_i32_0 = arith.constant 0 : i32
    return %arg0, %c0_i32 : i32, i32
  }
}

</mosaic_0001>

<llo_original>
// kernel: tpu_custom_call.1
$region0: #{tpu_custom_call.1}
  #allocation0 [shape = 'u32[]', space=smem, size = 0x4, offset = 0x4, fixed_abs, tag = 'smem constant byte address 0x4 - core index']
  #allocation1 [shape = 'u32[144,128]{1,0:T(1,128)}', space=vmem, size = 0x12000, scoped, tag = 'internal scratch']
  #allocation2 [shape = 'f32[2,1024]{1,0:T(2,128)}', space=vmem, size = 0x2000, scoped, tag = 'scratch operand']
  %s0 = inlined_call_operand.hbm [shape: f32[2,1024], index: 0, kind: input, shape index: {}]
  %s1 = inlined_call_operand.hbm [shape: f32[1,1], index: 1, kind: output, shape index: {}]
  %s2 = sld [smem:[#allocation0]]
  $region26: #{tpu_custom_call.1} parent=0
    _
  %s4 = ssub.s32 1, %s2
  %s5 = scalar_select 0, %s4, %s2
  $region1: #{tpu_custom_call.1} parent=0
    #allocation3 [shape = 'u8[8192]{0}', space=vmem, size = 0x2000, scoped, tag = 'input window, operand 0, single buffered']
    #allocation4 [shape = 's32[1]{0}', space=sflag, size = 0x4, scoped, tag = 'scoped memory for tpu_custom_call.1']
    #allocation5 [shape = 's32[1]{0}', space=sflag, size = 0x4, scoped, tag = 'scoped memory for tpu_custom_call.1']
    #allocation6 [shape = 'u8[512]{0}', space=smem, size = 0x200, scoped, tag = 'output window, operand 0, single buffered']
    %6 = vsyncpa [#allocation4], 0
    %7 = vsyncpa [#allocation5], 0
    // Predicated region
    $region2: #{tpu_custom_call.1} parent=1 // pred_check
      _
    $region3: #{tpu_custom_call.1} parent=1 // pred_check_branch
      %9 = sbr.rel (0) target = $region5
    $region4: #{tpu_custom_call.1} parent=1 // pred_region
      %s10 = sadd.s32 0, 0
      %s11 = smul.u32 8, %s10
      %s13 = ssub.s32 256, 256
      %14 = vsyncadd [#allocation4], %s13
      %s15 = smul.addr %s11, 32
      %s16 = scalar_lea.hbm %s0, %s15
      %s18 = sshll.u32 [#allocation3], 4
      %s19 = int_to_ptr.vmem [resolvable:$true] %s18
      %21 = dma.hbm_to_vmem [thread:$0]  %s16, 256, %s19, [#allocation4]
    $region5: #{tpu_custom_call.1} parent=1 // pred_fallthru
      _
    // Predicated region
    $region6: #{tpu_custom_call.1} parent=1 // pred_check
      _
    $region7: #{tpu_custom_call.1} parent=1 // pred_check_branch
      %23 = sbr.rel (0) target = $region9
    $region8: #{tpu_custom_call.1} parent=1 // pred_region
      %24 = dma.done [#allocation4], 256
    $region9: #{tpu_custom_call.1} parent=1 // pred_fallthru
      _
    %s25 = sadd.s32 0, 0
    %s26 = smul.u32 8, %s25
    %p27 = scmp.eq.s32.totalorder 0, 0
    // Predicated region
    $region10: #{tpu_custom_call.1} parent=1 // pred_check
      %p28 = pneg %p27
    $region11: #{tpu_custom_call.1} parent=1 // pred_check_branch
      %30 = sbr.rel (%p28) target = $region13
    $region12: #{tpu_custom_call.1} parent=1 // pred_region
      %31 = vst [vmem:[#allocation2] sm:$0xff] 0.0
      %32 = vst [vmem:[#allocation2 + $0x8] sm:$0xff] 0.0
    $region13: #{tpu_custom_call.1} parent=1 // pred_fallthru
      _
    %v33 = vld [vmem:[#allocation3] sm:$0xff]
    %v34 = vld [vmem:[#allocation3 + $0x8] sm:$0xff]
    %v35 = vld [vmem:[#allocation2] sm:$0xff]
    %v36 = vld [vmem:[#allocation2 + $0x8] sm:$0xff]
    %v37 = vmul.f32 %v33, %v33
    %v38 = vmul.f32 %v34, %v34
    %v39 = vadd.f32 %v35, %v37
    %v40 = vadd.f32 %v36, %v38
    %41 = vst [vmem:[#allocation2] sm:$0xff] %v39
    %42 = vst [vmem:[#allocation2 + $0x8] sm:$0xff] %v40
    // Predicated region
    $region14: #{tpu_custom_call.1} parent=1 // pred_check
      %p43 = pneg %p27
    $region15: #{tpu_custom_call.1} parent=1 // pred_check_branch
      %45 = sbr.rel (%p43) target = $region17
    $region16: #{tpu_custom_call.1} parent=1 // pred_region
      %v46 = vld [vmem:[#allocation2] sm:$0xff]
      %v47 = vld [vmem:[#allocation2 + $0x8] sm:$0xff]
      %v50 = vcombine.high %v46, %v46
      %v52 = vunpack.c.l.s4 1983009808
      %v53 = vunpack.c.0.s8 %v52
      %v54 = vlaneseq
      %v55 = vshrl.u32 %v54, 7
      %v56 = vsub.s32 %v53, %v55
      %v57 = vrot.slane %v46, %v56
      %v59 = vunpack.c.l.s4 1983009808
      %v60 = vunpack.c.0.s8 %v59
      %v61 = vlaneseq
      %v62 = vshrl.u32 %v61, 7
      %v63 = vsub.s32 %v60, %v62
      %v64 = vrot.slane %v50, %v63
      %v65 = vcombine.high %v57, %v57
      %v66 = vcombine.high %v64, %v64
      %v67 = vcombine.high %v47, %v47
      %v69 = vunpack.c.l.s4 1983009808
      %v70 = vunpack.c.0.s8 %v69
      %v71 = vlaneseq
      %v72 = vshrl.u32 %v71, 7
      %v73 = vsub.s32 %v70, %v72
      %v74 = vrot.slane %v47, %v73
      %v76 = vunpack.c.l.s4 1983009808
      %v77 = vunpack.c.0.s8 %v76
      %v78 = vlaneseq
      %v79 = vshrl.u32 %v78, 7
      %v80 = vsub.s32 %v77, %v79
      %v81 = vrot.slane %v67, %v80
      %v82 = vcombine.high %v74, %v74
      %v83 = vcombine.high %v81, %v81
      %vm92 = vcmask 1041408
      %v93 = vsel %vm92, %v57, 0.0
      %v94 = vsel %vm92, %v65, 0.0
      %v95 = vadd.f32 %v93, %v94
      %v96 = vsel %vm92, %v64, 0.0
      %v97 = vadd.f32 %v95, %v96
      %v98 = vsel %vm92, %v66, 0.0
      %v99 = vadd.f32 %v97, %v98
      %v100 = vsel %vm92, %v74, 0.0
      %v101 = vadd.f32 %v99, %v100
      %v102 = vsel %vm92, %v82, 0.0
      %v103 = vadd.f32 %v101, %v102
      %v104 = vsel %vm92, %v81, 0.0
      %v105 = vadd.f32 %v103, %v104
      %v106 = vsel %vm92, %v83, 0.0
      %v107 = vadd.f32 %v105, %v106
      %108 = vadd.xlane.f32.xlu0 %v107
      %v109 = vpop.xlane.xlu0 %108
      %v110 = vrot.slane %v109, 4
      %v111 = vadd.f32 %v109, %v110
      %v112 = vrot.slane %v111, 2
      %v113 = vadd.f32 %v111, %v112
      %v114 = vrot.slane %v113, 1
      %v115 = vadd.f32 %v113, %v114
      %s116 = vtos %v115
      %s117 = smul.f32 %s116, 2.5
      %s118 = scalar_lea.smem [#allocation6], 0
      %119 = sst [smem:[%s118]] %s117
    $region17: #{tpu_custom_call.1} parent=1 // pred_fallthru
      _
    // Predicated region
    $region18: #{tpu_custom_call.1} parent=1 // pred_check
      _
    $region19: #{tpu_custom_call.1} parent=1 // pred_check_branch
      %121 = sbr.rel (0) target = $region21
    $region20: #{tpu_custom_call.1} parent=1 // pred_region
      %s123 = ssub.s32 16, 16
      %124 = vsyncadd [#allocation5], %s123
      %127 = dma.smem_to_hbm [#allocation6], 16, %s1, [#allocation5]
    $region21: #{tpu_custom_call.1} parent=1 // pred_fallthru
      _
    // Predicated region
    $region22: #{tpu_custom_call.1} parent=1 // pred_check
      _
    $region23: #{tpu_custom_call.1} parent=1 // pred_check_branch
      %129 = sbr.rel (0) target = $region25
    $region24: #{tpu_custom_call.1} parent=1 // pred_region
      %130 = dma.done [#allocation5], 16
    $region25: #{tpu_custom_call.1} parent=1 // pred_fallthru
      _
    %131 = sfence
    %132 = vsyncpa [#allocation4], 1
    %133 = vsyncpa [#allocation5], 1

</llo_original>
